<compile_context>
chip_gen: v7x
topology: tpu7x:2x2x1
jax: 0.10.0
libtpu: 0.0.40
codegen_flags: <defaults>
</compile_context>

<pallas_src>
import functools

import jax
import jax.numpy as jnp
from jax import lax
from jax.experimental import pallas as pl
from jax.experimental.pallas import tpu as pltpu


def _cdae_fwd_kernel(x_ref, w_ref, b_ref, o_ref):
    """relu(W @ patches + b) on one lane-dense column tile.

    x_ref : (1, K, t)      bfloat16   im2col patches (mask already folded in)
    w_ref : (Cout, K)      bfloat16   conv weight as a matmul matrix (resident)
    b_ref : (Cout, 1)      float32    bias (resident)
    o_ref : (1, Cout, t)   float32    flat-NCHW output slab
    """
    y = jnp.dot(w_ref[...], x_ref[0], preferred_element_type=jnp.float32)
    y = y + b_ref[...]
    o_ref[0] = jnp.maximum(y, 0.0).astype(o_ref.dtype)


def _round_up(x, m):
    return (x + m - 1) // m * m


def _vmem_budget():
    """Return (physical VMEM bytes, per-step working-set budget in bytes)."""
    try:
        cap = int(pltpu.get_tpu_info().vmem_capacity_bytes)
    except Exception:          # interpret mode / exotic environments
        cap = 64 << 20         # assume the smallest (v7x per-TensorCore)
    # ~21 MiB budget on v7x (64 MiB physical, 32 MiB scoped default),
    # ~2x that on v5e/v6e (128 MiB physical).
    budget = min(cap // 3, 48 << 20)
    return cap, budget


def _pick_tile_cols(OHW, K, Cout, N, in_bytes, out_bytes):
    """Lane tile over the flattened OH*OW axis, from a K-aware VMEM budget."""
    cap, budget = _vmem_budget()
    resident = 2 * (Cout * K * in_bytes + Cout * 4)       # weight + bias (dbl-buffered)
    per_col = 2 * (K * in_bytes + Cout * out_bytes)       # dbl-buffered input + output
    max_t = max(128, (budget - resident) // per_col)
    if OHW <= max_t:
        t = OHW                                           # full-dim block (always legal)
        if N == 1 and OHW > 256:
            # keep >=2 grid steps so v7x can shard across both TensorCores
            t = _round_up(-(-OHW // 2), 128)
    else:
        t = max(128, (max_t // 128) * 128)                # lane-dense multiple of 128
    return t, cap


def _fused_patches(x_noisy, k, stride, OH, OW):
    """(N,C,H,W) -> (N, k*k*C, OH*OW) bf16.  For stride==k this is a single
    space-to-depth transpose; the mask multiply and bf16 cast fuse into it."""
    N, C, _, _ = x_noisy.shape
    if stride == k:
        xt = x_noisy[:, :, : OH * k, : OW * k].reshape(N, C, OH, k, OW, k)
        xt = jnp.transpose(xt, (0, 3, 5, 1, 2, 4))        # (N, ki, kj, C, OH, OW)
    else:
        # General-stride fallback (kernel_size=2, arbitrary stride).
        cols = [x_noisy[:, :, ki::stride, kj::stride][:, :, :OH, :OW]
                for ki in range(k) for kj in range(k)]
        xt = jnp.stack(cols, axis=1).reshape(N, k, k, C, OH, OW)
    return xt.reshape(N, k * k * C, OH * OW).astype(jnp.bfloat16)


@functools.partial(jax.jit, static_argnames=("stride",))
def cdae_forward(x_nchw, mask_nchw_i8, w_oihw, bias, *, stride):
    """Pallas-backed forward pass.

    x_nchw       : (N, Cin, H, W)     float32  (PyTorch layout)
    mask_nchw_i8 : (N, Cin, H, W)     int8     (precomputed 0/1 keep-mask)
    w_oihw       : (Cout, Cin, 2, 2)  float32  (PyTorch Conv2d weight layout)
    bias         : (Cout,)            float32
    returns      : (N, Cout, OH, OW)  float32
    """
    k = 2
    N, Cin, H, W = x_nchw.shape
    Cout = w_oihw.shape[0]
    OH = (H - k) // stride + 1
    OW = (W - k) // stride + 1
    K = k * k * Cin
    OHW = OH * OW

    # ---- single fused input pass: mask * x -> bf16 -> space-to-depth ----
    x_noisy = x_nchw * mask_nchw_i8.astype(x_nchw.dtype)
    xT = _fused_patches(x_noisy, k, stride, OH, OW)            # (N, K, OHW) bf16

    # Conv weight (Cout, Cin, kH, kW) -> (Cout, kH*kW*Cin); column order matches
    # the patch row order above: (ki*k + kj)*Cin + c.
    w_mat = jnp.transpose(w_oihw, (0, 2, 3, 1)).reshape(Cout, K).astype(jnp.bfloat16)
    b_col = bias.reshape(Cout, 1).astype(jnp.float32)

    # ---- tiling: lane tile over OH*OW from the chip's VMEM budget ----
    t, vmem_cap = _pick_tile_cols(OHW, K, Cout, N, in_bytes=2, out_bytes=4)
    n_bands = pl.cdiv(OHW, t)
    step_bytes = 2 * (K * 2 + Cout * 4) * t + 2 * (Cout * K * 2 + Cout * 4)
    vmem_limit = int(min(vmem_cap * 0.9, max(step_bytes + (8 << 20), 32 << 20)))

    cost = pl.CostEstimate(
        flops=2 * N * OHW * K * Cout,
        transcendentals=0,
        bytes_accessed=(N * K * OHW * 2        # bf16 patches
                        + Cout * K * 2         # bf16 weight
                        + Cout * 4             # bias
                        + N * Cout * OHW * 4   # f32 output
                        ),
    )

    out_flat = pl.pallas_call(
        _cdae_fwd_kernel,
        out_shape=jax.ShapeDtypeStruct((N, Cout, OHW), jnp.float32),
        grid_spec=pltpu.PrefetchScalarGridSpec(
            num_scalar_prefetch=0,
            grid=(N, n_bands),
            in_specs=[
                pl.BlockSpec((1, K, t), lambda n, j: (n, 0, j)),      # patches (tiled)
                pl.BlockSpec((Cout, K), lambda n, j: (0, 0)),         # weight (resident)
                pl.BlockSpec((Cout, 1), lambda n, j: (0, 0)),         # bias   (resident)
            ],
            out_specs=pl.BlockSpec((1, Cout, t), lambda n, j: (n, 0, j)),
        ),
        compiler_params=pltpu.CompilerParams(
            dimension_semantics=("parallel", "parallel"),             # v7x: both TCs
            vmem_limit_bytes=vmem_limit),
        cost_estimate=cost,
    )(xT, w_mat, b_col)

    # Metadata-only reshape: (N, Cout, OH*OW) is already NCHW byte order.
    return out_flat.reshape(N, Cout, OH, OW)


def _reference_forward(x_nchw, mask_nchw, w_oihw, bias, stride):
    """Plain-JAX reference on the same bf16-rounded operands the kernel uses."""
    x_noisy = (x_nchw * mask_nchw).astype(jnp.bfloat16).astype(jnp.float32)
    w_f = w_oihw.astype(jnp.bfloat16).astype(jnp.float32)
    y = lax.conv_general_dilated(
        x_noisy, w_f, window_strides=(stride, stride), padding="VALID",
        dimension_numbers=("NCHW", "OIHW", "NCHW"))
    y = y + bias[None, :, None, None]
    return jnp.maximum(y, 0.0)


if __name__ == "__main__":
    # Module config: input_size=4, output_size=8, stride=2  (kernel_size=2 fixed)
    N, Cin, H, W = 2, 4, 16, 16
    Cout, ksz, stride = 8, 2, 2

    key = jax.random.PRNGKey(0)
    kx, kn, kw, kb = jax.random.split(key, 4)

    x = jax.random.normal(kx, (N, Cin, H, W), dtype=jnp.float32)

    # x_noisy = x * (normal(0, 0.1) > -0.1)  ==  x * (std_normal > -1)
    noise = jax.random.normal(kn, (N, Cin, H, W), dtype=jnp.float32) * 0.1
    mask_i8 = (noise > -0.1).astype(jnp.int8)

    # Deterministic synthetic parameters (PyTorch default-init-like scale):
    fan_in = Cin * ksz * ksz
    bound = 1.0 / float(fan_in) ** 0.5
    w = jax.random.uniform(kw, (Cout, Cin, ksz, ksz), jnp.float32,
                           minval=-bound, maxval=bound)
    b = jax.random.uniform(kb, (Cout,), jnp.float32,
                           minval=-bound, maxval=bound)

    y = cdae_forward(x, mask_i8, w, b, stride=stride)
    y = jax.block_until_ready(y)

    y_ref = _reference_forward(x, mask_i8.astype(jnp.float32), w, b, stride)
    assert y.shape == (N, Cout, H // stride, W // stride), y.shape
    assert jnp.allclose(y, y_ref, atol=1e-4, rtol=1e-4), \
        float(jnp.max(jnp.abs(y - y_ref)))

    print("KERNEL_OK")
</pallas_src>

<mosaic_0001>
module attributes {stable_mosaic.version = 11 : i64} {
  func.func @_cdae_fwd_kernel(%arg0: i32, %arg1: i32, %arg2: memref<1x16x64xbf16, #tpu.memory_space<vmem>>, %arg3: memref<8x16xbf16, #tpu.memory_space<vmem>>, %arg4: memref<8x1xf32, #tpu.memory_space<vmem>>, %arg5: memref<1x8x64xf32, #tpu.memory_space<vmem>>) attributes {dimension_semantics = [#tpu.dimension_semantics<parallel>, #tpu.dimension_semantics<parallel>], iteration_bounds = array<i64: 2, 1>, scalar_prefetch = 0 : i64, scratch_operands = 0 : i64, tpu.core_type = #tpu.core_type<tc>, window_params = [{transform_indices = @transform_0, window_bounds = array<i64: 1, 16, 64>}, {pipeline_mode = #tpu.pipeline_mode<synchronous>, transform_indices = @transform_1, window_bounds = array<i64: 8, 16>}, {pipeline_mode = #tpu.pipeline_mode<synchronous>, transform_indices = @transform_2, window_bounds = array<i64: 8, 1>}, {transform_indices = @transform_3, window_bounds = array<i64: 1, 8, 64>}]} {
    %c0 = arith.constant 0 : index
    %c0_0 = arith.constant 0 : index
    %0 = vector.load %arg3[%c0, %c0_0] : memref<8x16xbf16, #tpu.memory_space<vmem>>, vector<8x16xbf16>
    %c0_1 = arith.constant 0 : index
    %c0_2 = arith.constant 0 : index
    %c0_3 = arith.constant 0 : index
    %1 = vector.load %arg2[%c0_1, %c0_2, %c0_3] : memref<1x16x64xbf16, #tpu.memory_space<vmem>>, vector<1x16x64xbf16>
    %2 = vector.shape_cast %1 : vector<1x16x64xbf16> to vector<16x64xbf16>
    %cst = arith.constant dense<0.000000e+00> : vector<8x64xf32>
    %3 = tpu.matmul %0, %2, %cst {dimension_numbers = #tpu.dot_dimension_numbers<[1], [0], [0], [1], [0, 0, 1, 1], [], []>} : vector<8x16xbf16>, vector<16x64xbf16>, vector<8x64xf32> -> vector<8x64xf32>
    %c0_4 = arith.constant 0 : index
    %c0_5 = arith.constant 0 : index
    %4 = vector.load %arg4[%c0_4, %c0_5] : memref<8x1xf32, #tpu.memory_space<vmem>>, vector<8x1xf32>
    %5 = vector.broadcast %4 : vector<8x1xf32> to vector<8x64xf32>
    %6 = arith.addf %3, %5 : vector<8x64xf32>
    %cst_6 = arith.constant 0.000000e+00 : f32
    %7 = vector.broadcast %cst_6 : f32 to vector<8x64xf32>
    %8 = arith.maximumf %6, %7 : vector<8x64xf32>
    %c0_7 = arith.constant 0 : index
    %c0_8 = arith.constant 0 : index
    %c0_9 = arith.constant 0 : index
    %9 = vector.load %arg5[%c0_7, %c0_8, %c0_9] : memref<1x8x64xf32, #tpu.memory_space<vmem>>, vector<1x8x64xf32>
    %10 = vector.shape_cast %9 : vector<1x8x64xf32> to vector<8x64xf32>
    %11 = vector.shape_cast %8 : vector<8x64xf32> to vector<1x8x64xf32>
    tpu.vector_store %arg5[%c0_7, %c0_8, %c0_9], %11 {strides = array<i32>} : memref<1x8x64xf32, #tpu.memory_space<vmem>>, vector<1x8x64xf32>,
    return
  }
  func.func @transform_0(%arg0: i32, %arg1: i32) -> (i32, i32, i32) {
    %c0_i32 = arith.constant 0 : i32
    %c0_i32_0 = arith.constant 0 : i32
    return %arg0, %c0_i32, %arg1 : i32, i32, i32
  }
  func.func @transform_1(%arg0: i32, %arg1: i32) -> (i32, i32) {
    %c0_i32 = arith.constant 0 : i32
    %c0_i32_0 = arith.constant 0 : i32
    %c0_i32_1 = arith.constant 0 : i32
    return %c0_i32, %c0_i32_0 : i32, i32
  }
  func.func @transform_2(%arg0: i32, %arg1: i32) -> (i32, i32) {
    %c0_i32 = arith.constant 0 : i32
    %c0_i32_0 = arith.constant 0 : i32
    %c0_i32_1 = arith.constant 0 : i32
    return %c0_i32, %c0_i32_0 : i32, i32
  }
  func.func @transform_3(%arg0: i32, %arg1: i32) -> (i32, i32, i32) {
    %c0_i32 = arith.constant 0 : i32
    %c0_i32_0 = arith.constant 0 : i32
    return %arg0, %c0_i32, %arg1 : i32, i32, i32
  }
}

</mosaic_0001>

<llo_original>
// kernel: cdae_forward.1
$region0: #{cdae_forward.1}
  #allocation0 [shape = 'u32[]', space=smem, size = 0x4, offset = 0x4, fixed_abs, tag = 'smem constant byte address 0x4 - core index']
  #allocation1 [shape = 'u32[144,128]{1,0:T(1,128)}', space=vmem, size = 0x12000, scoped, tag = 'internal scratch']
  %s0 = inlined_call_operand.vmem [shape: bf16[2,16,64], index: 0, kind: input, shape index: {}]
  %s1 = inlined_call_operand.vmem [shape: bf16[8,16], index: 1, kind: input, shape index: {}]
  %s2 = inlined_call_operand.vmem [shape: f32[8,1], index: 2, kind: input, shape index: {}]
  %s3 = inlined_call_operand.vmem [shape: f32[2,8,64], index: 3, kind: output, shape index: {}]
  %s4 = sld [smem:[#allocation0]]
  $region45: #{cdae_forward.1} parent=0
    _
  %s6 = ssub.s32 1, %s4
  %s7 = scalar_select 0, %s6, %s4
  loop: start=0, step=1, limit=4
  $region2: #{cdae_forward.1} parent=0 // loop_pre_header
    _
  $region3: #{cdae_forward.1} parent=0 // loop_header
    %s9 = sphi 0, %s13
    %p10 = scmp.ge.s32.totalorder %s9, 4
    %s16 = sphi 0, %s28
    %s17 = sphi 0, %s24
    %s18 = sphi 0, %s16
    %s19 = sphi 0, %s17
    %s20 = sphi 0, %s18
    %s21 = sphi 0, %s19
    %s33 = sphi 0, %s35
    %s36 = sphi 0, %s33
    %s37 = sphi 0, %s36
    %s53 = sphi 0, %s37
    %s57 = sphi 0, %s57
    %s59 = sphi 0, %s57
    %s60 = sphi 0, %s59
    %s74 = sphi 0, %s60
    %s78 = sphi 0, %s78
    %s80 = sphi 0, %s78
    %s81 = sphi 0, %s80
    %s95 = sphi 0, %s81
    %s103 = sphi 0, %s105
    %s106 = sphi 0, %s103
    %s107 = sphi 0, %s106
    %s123 = sphi 0, %s107
  $region4: #{cdae_forward.1} parent=0 // loop_header_branch
    %12 = sbr.rel (%p10) target = $region8
  $region5: #{cdae_forward.1} parent=0 // loop_body
    %s14 = ssub.s32 %s9, 1
    %s15 = ssub.s32 %s9, 2
    %s22 = sadd.s32 1, %s17
    %p23 = scmp.ge.s32.totalorder %s22, 1
    %s24 = scalar_select %p23, 0, %s22
    %s25 = sadd.s32 1, %s16
    %s26 = scalar_select %p23, %s25, %s16
    %p27 = scmp.ge.s32.totalorder %s26, 2
    %s28 = scalar_select %p27, 0, %s26
    %s29 = ssub.s32 %s16, %s28
    %s30 = ssub.s32 %s17, %s24
    %s31 = sor.u32 %s29, %s30
    %p32 = scmp.eq.s32.totalorder %s31, 0
    %s34 = sadd.s32 %s33, 1
    %s35 = scalar_select %p32, %s33, %s34
    %p38 = pneg %p32
    %p39 = scmp.eq.s32.totalorder %s9, 1
    %p40 = por %p38, %p39
    %p41 = scmp.ne.s32.totalorder %s33, %s36
    %p42 = scmp.eq.s32.totalorder %s9, 0
    %p43 = por %p41, %p42
    %p44 = scmp.ne.s32.totalorder %s33, %s36
    %p45 = scmp.eq.s32.totalorder %s14, 1
    %p46 = por %p44, %p45
    %p47 = scmp.ne.s32.totalorder %s36, %s37
    %p48 = scmp.eq.s32.totalorder %s14, 0
    %p49 = por %p47, %p48
    %p50 = scmp.ne.s32.totalorder %s36, %s37
    %p51 = scmp.eq.s32.totalorder %s15, 1
    %p52 = por %p50, %p51
    %p54 = scmp.ne.s32.totalorder %s37, %s53
    %p55 = scmp.eq.s32.totalorder %s15, 0
    %p56 = por %p54, %p55
    %s58 = sadd.s32 %s57, 1
    %p61 = scmp.eq.s32.totalorder %s9, 1
    %p62 = scmp.ne.s32.totalorder %s57, %s59
    %p63 = scmp.eq.s32.totalorder %s9, 0
    %p64 = por %p62, %p63
    %p65 = scmp.ne.s32.totalorder %s57, %s59
    %p66 = scmp.eq.s32.totalorder %s14, 1
    %p67 = por %p65, %p66
    %p68 = scmp.ne.s32.totalorder %s59, %s60
    %p69 = scmp.eq.s32.totalorder %s14, 0
    %p70 = por %p68, %p69
    %p71 = scmp.ne.s32.totalorder %s59, %s60
    %p72 = scmp.eq.s32.totalorder %s15, 1
    %p73 = por %p71, %p72
    %p75 = scmp.ne.s32.totalorder %s60, %s74
    %p76 = scmp.eq.s32.totalorder %s15, 0
    %p77 = por %p75, %p76
    %s79 = sadd.s32 %s78, 1
    %p82 = scmp.eq.s32.totalorder %s9, 1
    %p83 = scmp.ne.s32.totalorder %s78, %s80
    %p84 = scmp.eq.s32.totalorder %s9, 0
    %p85 = por %p83, %p84
    %p86 = scmp.ne.s32.totalorder %s78, %s80
    %p87 = scmp.eq.s32.totalorder %s14, 1
    %p88 = por %p86, %p87
    %p89 = scmp.ne.s32.totalorder %s80, %s81
    %p90 = scmp.eq.s32.totalorder %s14, 0
    %p91 = por %p89, %p90
    %p92 = scmp.ne.s32.totalorder %s80, %s81
    %p93 = scmp.eq.s32.totalorder %s15, 1
    %p94 = por %p92, %p93
    %p96 = scmp.ne.s32.totalorder %s81, %s95
    %p97 = scmp.eq.s32.totalorder %s15, 0
    %p98 = por %p96, %p97
    %s99 = ssub.s32 %s16, %s28
    %s100 = ssub.s32 %s17, %s24
    %s101 = sor.u32 %s99, %s100
    %p102 = scmp.eq.s32.totalorder %s101, 0
    %s104 = sadd.s32 %s103, 1
    %s105 = scalar_select %p102, %s103, %s104
    %p108 = pneg %p102
    %p109 = scmp.eq.s32.totalorder %s9, 1
    %p110 = por %p108, %p109
    %p111 = scmp.ne.s32.totalorder %s103, %s106
    %p112 = scmp.eq.s32.totalorder %s9, 0
    %p113 = por %p111, %p112
    %p114 = scmp.ne.s32.totalorder %s103, %s106
    %p115 = scmp.eq.s32.totalorder %s14, 1
    %p116 = por %p114, %p115
    %p117 = scmp.ne.s32.totalorder %s106, %s107
    %p118 = scmp.eq.s32.totalorder %s14, 0
    %p119 = por %p117, %p118
    %p120 = scmp.ne.s32.totalorder %s106, %s107
    %p121 = scmp.eq.s32.totalorder %s15, 1
    %p122 = por %p120, %p121
    %p124 = scmp.ne.s32.totalorder %s107, %s123
    %p125 = scmp.eq.s32.totalorder %s15, 0
    %p126 = por %p124, %p125
    %p127 = scmp.le.s32.totalorder 1, %s9
    %p128 = scmp.lt.s32.totalorder %s9, 3
    %p129 = pnand %p127, %p128
    %p130 = pneg %p129
    // Predicated region
    $region9: #{cdae_forward.1} parent=5 // pred_check
      _
    $region10: #{cdae_forward.1} parent=5 // pred_check_branch
      %132 = sbr.rel (%p129) target = $region12
    $region11: #{cdae_forward.1} parent=5 // pred_region
      %s133 = ssub.s32 %s9, 1
      // Predicated region
      $region13: #{cdae_forward.1} parent=11 // pred_check
        %p134 = pneg %p70
      $region14: #{cdae_forward.1} parent=11 // pred_check_branch
        %136 = sbr.rel (%p134) target = $region16
      $region15: #{cdae_forward.1} parent=11 // pred_region
        _
      $region16: #{cdae_forward.1} parent=11 // pred_fallthru
        _
      // Predicated region
      $region17: #{cdae_forward.1} parent=11 // pred_check
        %p137 = pneg %p91
      $region18: #{cdae_forward.1} parent=11 // pred_check_branch
        %139 = sbr.rel (%p137) target = $region20
      $region19: #{cdae_forward.1} parent=11 // pred_region
        _
      $region20: #{cdae_forward.1} parent=11 // pred_fallthru
        _
    $region12: #{cdae_forward.1} parent=5 // pred_fallthru
      _
    %p140 = scmp.lt.s32.totalorder %s9, 2
    // Predicated region
    $region21: #{cdae_forward.1} parent=5 // pred_check
      %p141 = pneg %p140
    $region22: #{cdae_forward.1} parent=5 // pred_check_branch
      %143 = sbr.rel (%p141) target = $region24
    $region23: #{cdae_forward.1} parent=5 // pred_region
      // Predicated region
      $region25: #{cdae_forward.1} parent=23 // pred_check
        %p144 = pneg %p43
      $region26: #{cdae_forward.1} parent=23 // pred_check_branch
        %146 = sbr.rel (%p144) target = $region28
      $region27: #{cdae_forward.1} parent=23 // pred_region
        %p147 = scmp.lt.s32.totalorder %s16, 1
        %s148 = scalar_select %p147, %s16, 1
        %p149 = scmp.lt.s32.totalorder %s17, 0
        %s150 = scalar_select %p149, %s17, 0
        %s151 = smul.addr %s148, 2
        %s152 = sadd.s32 %s150, %s151
        %s153 = smul.addr %s152, 4
        %s154 = scalar_lea.vmem %s0, %s153
      $region28: #{cdae_forward.1} parent=23 // pred_fallthru
        _
    $region24: #{cdae_forward.1} parent=5 // pred_fallthru
      _
    %p155 = scmp.le.s32.totalorder 1, %s9
    %p156 = scmp.lt.s32.totalorder %s9, 3
    %p157 = pnand %p155, %p156
    %p158 = pneg %p157
    // Predicated region
    $region29: #{cdae_forward.1} parent=5 // pred_check
      _
    $region30: #{cdae_forward.1} parent=5 // pred_check_branch
      %160 = sbr.rel (%p157) target = $region32
    $region31: #{cdae_forward.1} parent=5 // pred_region
      %s161 = ssub.s32 %s9, 1
      %p162 = scmp.lt.s32.totalorder %s18, 1
      %s163 = scalar_select %p162, %s18, 1
      %p164 = scmp.lt.s32.totalorder %s19, 0
      %s165 = scalar_select %p164, %s19, 0
      %s166 = smul.addr %s163, 2
      %s167 = sadd.s32 %s165, %s166
      %s168 = smul.addr %s167, 4
      %s169 = scalar_lea.vmem %s0, %s168
      %p170 = pneg %p49
      %p171 = pneg %p46
      %p172 = pneg %p70
      %p173 = pneg %p67
      %p174 = pneg %p91
      %p175 = pneg %p88
      %p176 = pneg %p119
      %p177 = pneg %p116
      %p178 = scmp.lt.s32.totalorder %s18, 1
      %s179 = scalar_select %p178, %s18, 1
      %p180 = scmp.lt.s32.totalorder %s19, 0
      %s181 = scalar_select %p180, %s19, 0
      %s182 = sadd.s32 %s181, %s179
      %s183 = smul.addr %s182, 8
      %s184 = scalar_lea.vmem %s3, %s183
      %p185 = scmp.lt.s32.totalorder %s18, 1
      %s186 = scalar_select %p185, %s18, 1
      %p187 = scmp.lt.s32.totalorder %s19, 0
      %s188 = scalar_select %p187, %s19, 0
      %s189 = smul.addr %s186, 2
      %s190 = sadd.s32 %s188, %s189
      %s191 = smul.addr %s190, 4
      %s192 = scalar_lea.vmem %s0, %s191
      %p193 = scmp.lt.s32.totalorder %s18, 1
      %s194 = scalar_select %p193, %s18, 1
      %p195 = scmp.lt.s32.totalorder %s19, 0
      %s196 = scalar_select %p195, %s19, 0
      %s197 = sadd.s32 %s196, %s194
      %s198 = smul.addr %s197, 8
      %s199 = scalar_lea.vmem %s3, %s198
      %v201 = vld [vmem:[%s1] sm:$0xf]
      %v202 = vld [vmem:[%s192] sm:$0xf]
      %v203 = vld [vmem:[%s192 + $0x4] sm:$0xf]
      %v204 = vld [vmem:[%s2] sm:$0xff]
      %206 = vset.pattern.permute.xlu0 0
      %207 = vperm.xlu0 %206, %v204
      %v208 = vpop.permute.xlu0 %207
      %v212 = vunpack.c.l.b16 %v202
      %v213 = vunpack.c.l.b16 %v203
      %v214 = vpack.c.b16 %v213, %v212
      %vm216 = vcmask 130048
      %v218 = vsel %vm216, %v201, 0
      %220 = vmatprep.subr.bf16.mxu0 0
      %221 = vmatpush1.bf16.msra.mxu0 %v214
      %222 = vmatprep.subr.bf16.mxu0 0
      %223 = vmatpush1.bf16.msra.mxu0 0
      %224 = vmatprep.subr.bf16.mxu0 0
      %225 = vmatpush1.bf16.msra.mxu0 0
      %226 = vmatprep.subr.bf16.mxu0 0
      %227 = vmatpush1.bf16.msra.mxu0 0
      %228 = vmatprep.subr.bf16.mxu0 0
      %229 = vmatpush1.bf16.msra.mxu0 0
      %230 = vmatprep.subr.bf16.mxu0 0
      %231 = vmatpush1.bf16.msra.mxu0 0
      %232 = vmatprep.subr.bf16.mxu0 0
      %233 = vmatpush1.bf16.msra.mxu0 0
      %234 = vmatprep.subr.bf16.mxu0 0
      %235 = vmatpush1.bf16.msra.mxu0 0
      %236 = vmatprep.subr.bf16.mxu0 0
      %237 = vmatpush1.bf16.msra.mxu0 0
      %238 = vmatprep.subr.bf16.mxu0 0
      %239 = vmatpush1.bf16.msra.mxu0 0
      %240 = vmatprep.subr.bf16.mxu0 0
      %241 = vmatpush1.bf16.msra.mxu0 0
      %242 = vmatprep.subr.bf16.mxu0 0
      %243 = vmatpush1.bf16.msra.mxu0 0
      %244 = vmatprep.subr.bf16.mxu0 0
      %245 = vmatpush1.bf16.msra.mxu0 0
      %246 = vmatprep.subr.bf16.mxu0 0
      %247 = vmatpush1.bf16.msra.mxu0 0
      %248 = vmatprep.subr.bf16.mxu0 0
      %249 = vmatpush1.bf16.msra.mxu0 0
      %250 = vmatprep.subr.bf16.mxu0 0
      %251 = vmatpush1.bf16.msra.mxu0 0
      %252 = vmatprep.mubr.bf16.mxu0 0
      %253 = vmatmul.mubr.bf16.gmra.mrb[0].mxu0 %v218
      %v254 = vpop.f32.mrb[0].mxu0
      %v255 = vadd.f32 %v208, %v254
      %v256 = vpop.f32.mrb[0].mxu0
      %v257 = vpop.f32.mrb[0].mxu0
      %v258 = vpop.f32.mrb[0].mxu0
      %259 = vdwg.mxu0
      %v260 = vmax.f32 %v255, 0.0
      %vm261 = vcmask 523264
      %262 = vst.msk [vmem:[%s199] sm:$0xff] %vm261, %v260
      %p263 = scmp.lt.s32.totalorder %s18, 1
      %s264 = scalar_select %p263, %s18, 1
      %p265 = scmp.lt.s32.totalorder %s19, 0
      %s266 = scalar_select %p265, %s19, 0
      %s267 = sadd.s32 %s266, %s264
      %s268 = smul.addr %s267, 8
      %s269 = scalar_lea.vmem %s3, %s268
      // Predicated region
      $region33: #{cdae_forward.1} parent=31 // pred_check
        %p270 = pneg %p116
      $region34: #{cdae_forward.1} parent=31 // pred_check_branch
        %272 = sbr.rel (%p270) target = $region36
      $region35: #{cdae_forward.1} parent=31 // pred_region
        _
      $region36: #{cdae_forward.1} parent=31 // pred_fallthru
        _
    $region32: #{cdae_forward.1} parent=5 // pred_fallthru
      _
    %p273 = scmp.le.s32.totalorder 2, %s9
    // Predicated region
    $region37: #{cdae_forward.1} parent=5 // pred_check
      %p274 = pneg %p273
    $region38: #{cdae_forward.1} parent=5 // pred_check_branch
      %276 = sbr.rel (%p274) target = $region40
    $region39: #{cdae_forward.1} parent=5 // pred_region
      %s277 = ssub.s32 %s9, 2
      // Predicated region
      $region41: #{cdae_forward.1} parent=39 // pred_check
        %p278 = pneg %p122
      $region42: #{cdae_forward.1} parent=39 // pred_check_branch
        %280 = sbr.rel (%p278) target = $region44
      $region43: #{cdae_forward.1} parent=39 // pred_region
        %p281 = scmp.lt.s32.totalorder %s20, 1
        %s282 = scalar_select %p281, %s20, 1
        %p283 = scmp.lt.s32.totalorder %s21, 0
        %s284 = scalar_select %p283, %s21, 0
        %s285 = sadd.s32 %s284, %s282
        %s286 = smul.addr %s285, 8
        %s287 = scalar_lea.vmem %s3, %s286
      $region44: #{cdae_forward.1} parent=39 // pred_fallthru
        _
    $region40: #{cdae_forward.1} parent=5 // pred_fallthru
      _
  $region6: #{cdae_forward.1} parent=0 // loop_footer
    %s13 = sadd.s32 1, %s9
  $region7: #{cdae_forward.1} parent=0 // loop_footer_branch
    %8 = sbr.rel target = $region3
  $region8: #{cdae_forward.1} parent=0 // loop_exit
    _

</llo_original>
